<compile_context>
chip_gen: v7x
topology: tpu7x:2x2x1
jax: 0.10.0
libtpu: 0.0.40
codegen_flags: <defaults>
</compile_context>

<pallas_src>
from functools import partial

import numpy as np
import jax
import jax.numpy as jnp
from jax.experimental import pallas as pl
from jax.experimental.pallas import tpu as pltpu

EPS = 1e-12          # F.normalize default eps
NEG_SLOPE = 0.01     # F.leaky_relu default negative_slope
LANES = 128          # per-component lane slab width


def _lrelu(x):
    return jnp.where(x >= 0, x, NEG_SLOPE * x)


def _fused_decoder_kernel(z_ref, a_ref, w1_ref, b1_ref, w2h_ref, w2a_ref,
                          b2_ref, w3h_ref, w3a_ref, b3_ref, out_ref):
    """fc1 -> lrelu -> fc2(split h/a) -> lrelu -> fc_out(split h/a) -> CRRD.

    fc_out weights/bias are laid out component-major: group g (v0x,v0y,v0z,
    v1x,v1y,v1z for g=0..5) occupies lanes [g*128, g*128+J) of a 6*128 wide
    output, zeros elsewhere.  out_ref has shape (9, Bt, 128); row c is the
    flattened rotation-matrix entry c, valid joints in lanes 0:J.
    """
    z = z_ref[...].astype(jnp.bfloat16)
    a = a_ref[...].astype(jnp.bfloat16)

    # fc1 + leaky_relu
    h = _lrelu(jnp.dot(z, w1_ref[...], preferred_element_type=jnp.float32)
               + b1_ref[...])

    # fc2 + leaky_relu  (split dot instead of cat([h, a]))
    h = _lrelu(
        jnp.dot(h.astype(jnp.bfloat16), w2h_ref[...],
                preferred_element_type=jnp.float32)
        + jnp.dot(a, w2a_ref[...], preferred_element_type=jnp.float32)
        + b2_ref[...])

    # fc_out (component-major, each group padded to its own 128-lane slab)
    net = (jnp.dot(h.astype(jnp.bfloat16), w3h_ref[...],
                   preferred_element_type=jnp.float32)
           + jnp.dot(a, w3a_ref[...], preferred_element_type=jnp.float32)
           + b3_ref[...])

    # --- ContinousRotReprDecoder, lane-parallel on (Bt, 128) slabs ---
    v0x = net[:, 0 * LANES:1 * LANES]
    v0y = net[:, 1 * LANES:2 * LANES]
    v0z = net[:, 2 * LANES:3 * LANES]
    v1x = net[:, 3 * LANES:4 * LANES]
    v1y = net[:, 4 * LANES:5 * LANES]
    v1z = net[:, 5 * LANES:6 * LANES]

    # b1 = normalize(v0);  1/max(||v||, eps) == rsqrt(max(||v||^2, eps^2))
    inv0 = jax.lax.rsqrt(jnp.maximum(v0x * v0x + v0y * v0y + v0z * v0z,
                                     EPS * EPS))
    b1x, b1y, b1z = v0x * inv0, v0y * inv0, v0z * inv0

    # b2 = normalize(v1 - <b1, v1> * b1)
    dot = b1x * v1x + b1y * v1y + b1z * v1z
    ux, uy, uz = v1x - dot * b1x, v1y - dot * b1y, v1z - dot * b1z
    invu = jax.lax.rsqrt(jnp.maximum(ux * ux + uy * uy + uz * uz, EPS * EPS))
    b2x, b2y, b2z = ux * invu, uy * invu, uz * invu

    # b3 = b1 x b2
    b3x = b1y * b2z - b1z * b2y
    b3y = b1z * b2x - b1x * b2z
    b3z = b1x * b2y - b1y * b2x

    # Row c of out = flattened entry c of stack([b1, b2, b3], dim=-1) (3x3).
    out_ref[0, :, :] = b1x
    out_ref[1, :, :] = b2x
    out_ref[2, :, :] = b3x
    out_ref[3, :, :] = b1y
    out_ref[4, :, :] = b2y
    out_ref[5, :, :] = b3y
    out_ref[6, :, :] = b1z
    out_ref[7, :, :] = b2z
    out_ref[8, :, :] = b3z


def prepare_params(torch_params, num_joints):
    """One-time host-side re-layout of PyTorch-style weights for the kernel."""
    J = num_joints
    h_dim, z_dim = np.asarray(torch_params["fc1.weight"]).shape
    in2 = np.asarray(torch_params["fc2.weight"]).shape[1]
    action_num = in2 - h_dim

    w1 = np.asarray(torch_params["fc1.weight"], np.float32).T      # (z, h)
    b1 = np.asarray(torch_params["fc1.bias"], np.float32)[None, :]
    w2 = np.asarray(torch_params["fc2.weight"], np.float32).T      # (h+a, h)
    b2 = np.asarray(torch_params["fc2.bias"], np.float32)[None, :]
    w3 = np.asarray(torch_params["fc_out.weight"], np.float32).T   # (h+a, 6J)
    b3 = np.asarray(torch_params["fc_out.bias"], np.float32)[None, :]

    # Split the concatenated input dim into the h-part and the a-part.
    w2h, w2a = w2[:h_dim], w2[h_dim:]
    w3h_raw, w3a_raw = w3[:h_dim], w3[h_dim:]

    # Component-major re-layout of fc_out: group g = k*3 + i (v0x..v1z) owns
    # lanes [g*128, g*128+J); source column for joint j is j*6 + i*2 + k.
    w3h = np.zeros((h_dim, 6 * LANES), np.float32)
    w3a = np.zeros((action_num, 6 * LANES), np.float32)
    b3p = np.zeros((1, 6 * LANES), np.float32)
    for k in range(2):
        for i in range(3):
            g = k * 3 + i
            cols = np.arange(J) * 6 + i * 2 + k
            w3h[:, g * LANES:g * LANES + J] = w3h_raw[:, cols]
            w3a[:, g * LANES:g * LANES + J] = w3a_raw[:, cols]
            b3p[:, g * LANES:g * LANES + J] = b3[:, cols]

    return {
        "w1": jnp.asarray(w1, jnp.bfloat16),
        "b1": jnp.asarray(b1, jnp.float32),
        "w2h": jnp.asarray(w2h, jnp.bfloat16),
        "w2a": jnp.asarray(w2a, jnp.bfloat16),
        "b2": jnp.asarray(b2, jnp.float32),
        "w3h": jnp.asarray(w3h, jnp.bfloat16),
        "w3a": jnp.asarray(w3a, jnp.bfloat16),
        "b3": jnp.asarray(b3p, jnp.float32),
    }


@partial(jax.jit, static_argnames=("num_joints",))
def pose_vae_decoder(z, a, w1, b1, w2h, w2a, b2, w3h, w3a, b3, *, num_joints):
    """Pallas implementation of PoseVAEDecoder.forward -> (B*num_joints, 3, 3)."""
    B, z_dim = z.shape
    action_num = a.shape[1]
    h_dim = w1.shape[1]
    J = num_joints
    OUT = 6 * LANES

    # Batch tiling: one block for small B, 512-row tiles (8-aligned) otherwise.
    Bt = 512 if B > 512 else B
    nb = pl.cdiv(B, Bt)
    B_pad = nb * Bt
    if B_pad != B:
        z = jnp.pad(z, ((0, B_pad - B), (0, 0)))
        a = jnp.pad(a, ((0, B_pad - B), (0, 0)))

    full = lambda i: (0, 0)   # weights / biases: same full block every step

    out = pl.pallas_call(
        _fused_decoder_kernel,
        out_shape=jax.ShapeDtypeStruct((9, B_pad, LANES), jnp.float32),
        grid=(nb,),
        in_specs=[
            pl.BlockSpec((Bt, z_dim), lambda i: (i, 0)),
            pl.BlockSpec((Bt, action_num), lambda i: (i, 0)),
            pl.BlockSpec((z_dim, h_dim), full),
            pl.BlockSpec((1, h_dim), full),
            pl.BlockSpec((h_dim, h_dim), full),
            pl.BlockSpec((action_num, h_dim), full),
            pl.BlockSpec((1, h_dim), full),
            pl.BlockSpec((h_dim, OUT), full),
            pl.BlockSpec((action_num, OUT), full),
            pl.BlockSpec((1, OUT), full),
        ],
        out_specs=pl.BlockSpec((9, Bt, LANES), lambda i: (0, i, 0)),
        compiler_params=pltpu.CompilerParams(
            dimension_semantics=("parallel",)),
    )(z, a, w1, b1, w2h, w2a, b2, w3h, w3a, b3)

    # (9, B_pad, 128) -> valid rows/lanes -> PyTorch (B*J, 3, 3) layout.
    # TODO(synk): fuse this tiny transpose/reshape into the downstream consumer.
    out = out[:, :B, :J]
    return jnp.transpose(out, (1, 2, 0)).reshape(B * J, 3, 3)


# ------------------------------ reference & demo ------------------------------

def reference(z, a, torch_params, *, match_bf16=False):
    """Pure-JAX replica of the PyTorch module (original weight layout).

    match_bf16=True mimics the kernel's bf16-operand / f32-accumulate matmuls so
    the comparison isolates layout/permutation correctness at tight tolerance.
    """
    if match_bf16:
        def mm(x, w):
            return jnp.dot(x.astype(jnp.bfloat16), w.astype(jnp.bfloat16),
                           preferred_element_type=jnp.float32)
    else:
        def mm(x, w):
            return jnp.dot(x, w)

    w1 = jnp.asarray(torch_params["fc1.weight"]).T
    b1 = jnp.asarray(torch_params["fc1.bias"])
    w2 = jnp.asarray(torch_params["fc2.weight"]).T
    b2 = jnp.asarray(torch_params["fc2.bias"])
    w3 = jnp.asarray(torch_params["fc_out.weight"]).T
    b3 = jnp.asarray(torch_params["fc_out.bias"])

    h = jax.nn.leaky_relu(mm(z, w1) + b1, NEG_SLOPE)
    h = jnp.concatenate([h, a], axis=1)
    h = jax.nn.leaky_relu(mm(h, w2) + b2, NEG_SLOPE)
    h = jnp.concatenate([h, a], axis=1)
    net = mm(h, w3) + b3

    r = net.reshape(-1, 3, 2)
    v0, v1 = r[:, :, 0], r[:, :, 1]
    b1v = v0 / jnp.maximum(jnp.linalg.norm(v0, axis=1, keepdims=True), EPS)
    dotp = jnp.sum(b1v * v1, axis=1, keepdims=True)
    u = v1 - dotp * b1v
    b2v = u / jnp.maximum(jnp.linalg.norm(u, axis=1, keepdims=True), EPS)
    b3v = jnp.cross(b1v, b2v)
    return jnp.stack([b1v, b2v, b3v], axis=-1)


def init_torch_style_params(key, z_dim, h_dim, action_num, out_dim):
    ks = jax.random.split(key, 6)
    s = 0.1
    return {
        "fc1.weight": s * jax.random.normal(ks[0], (h_dim, z_dim), jnp.float32),
        "fc1.bias": s * jax.random.normal(ks[1], (h_dim,), jnp.float32),
        "fc2.weight": s * jax.random.normal(ks[2], (h_dim, h_dim + action_num), jnp.float32),
        "fc2.bias": s * jax.random.normal(ks[3], (h_dim,), jnp.float32),
        "fc_out.weight": s * jax.random.normal(ks[4], (out_dim, h_dim + action_num), jnp.float32),
        "fc_out.bias": s * jax.random.normal(ks[5], (out_dim,), jnp.float32),
    }


if __name__ == "__main__":
    B, z_dim, h_dim, action_num, num_joints = 2, 32, 64, 4, 21
    out_dim = 6 * num_joints

    key = jax.random.PRNGKey(0)
    kz, ka, kp = jax.random.split(key, 3)
    z = jax.random.normal(kz, (B, z_dim), jnp.float32)
    a = jax.random.normal(ka, (B, action_num), jnp.float32)
    torch_params = init_torch_style_params(kp, z_dim, h_dim, action_num, out_dim)

    kparams = prepare_params(torch_params, num_joints)
    out = pose_vae_decoder(z, a,
                           kparams["w1"], kparams["b1"],
                           kparams["w2h"], kparams["w2a"], kparams["b2"],
                           kparams["w3h"], kparams["w3a"], kparams["b3"],
                           num_joints=num_joints)
    out = jax.block_until_ready(out)
    assert out.shape == (B * num_joints, 3, 3), out.shape

    # Tight check vs a bf16-matmul-matched reference (catches layout/perm bugs).
    ref_bf16 = reference(z, a, torch_params, match_bf16=True)
    err_tight = float(jnp.max(jnp.abs(out - ref_bf16)))
    assert err_tight < 1e-3, f"layout mismatch vs bf16-matched ref: {err_tight}"

    # Looser semantic check vs the full-f32 PyTorch-equivalent reference
    # (difference is only bf16 matmul rounding).
    ref_f32 = reference(z, a, torch_params, match_bf16=False)
    err_f32 = float(jnp.max(jnp.abs(out - ref_f32)))
    assert err_f32 < 1e-1, f"mismatch vs f32 reference: {err_f32}"

    print("KERNEL_OK")
</pallas_src>

<mosaic_0001>
module attributes {stable_mosaic.version = 11 : i64} {
  func.func @_fused_decoder_kernel(%arg0: i32, %arg1: memref<2x32xf32, #tpu.memory_space<vmem>>, %arg2: memref<2x4xf32, #tpu.memory_space<vmem>>, %arg3: memref<32x64xbf16, #tpu.memory_space<vmem>>, %arg4: memref<1x64xf32, #tpu.memory_space<vmem>>, %arg5: memref<64x64xbf16, #tpu.memory_space<vmem>>, %arg6: memref<4x64xbf16, #tpu.memory_space<vmem>>, %arg7: memref<1x64xf32, #tpu.memory_space<vmem>>, %arg8: memref<64x768xbf16, #tpu.memory_space<vmem>>, %arg9: memref<4x768xbf16, #tpu.memory_space<vmem>>, %arg10: memref<1x768xf32, #tpu.memory_space<vmem>>, %arg11: memref<9x2x128xf32, #tpu.memory_space<vmem>>) attributes {dimension_semantics = [#tpu.dimension_semantics<parallel>], iteration_bounds = array<i64: 1>, scalar_prefetch = 0 : i64, scratch_operands = 0 : i64, tpu.core_type = #tpu.core_type<tc>, window_params = [{transform_indices = @transform_0, window_bounds = array<i64: 2, 32>}, {transform_indices = @transform_1, window_bounds = array<i64: 2, 4>}, {pipeline_mode = #tpu.pipeline_mode<synchronous>, transform_indices = @transform_2, window_bounds = array<i64: 32, 64>}, {pipeline_mode = #tpu.pipeline_mode<synchronous>, transform_indices = @transform_3, window_bounds = array<i64: 1, 64>}, {pipeline_mode = #tpu.pipeline_mode<synchronous>, transform_indices = @transform_4, window_bounds = array<i64: 64, 64>}, {pipeline_mode = #tpu.pipeline_mode<synchronous>, transform_indices = @transform_5, window_bounds = array<i64: 4, 64>}, {pipeline_mode = #tpu.pipeline_mode<synchronous>, transform_indices = @transform_6, window_bounds = array<i64: 1, 64>}, {pipeline_mode = #tpu.pipeline_mode<synchronous>, transform_indices = @transform_7, window_bounds = array<i64: 64, 768>}, {pipeline_mode = #tpu.pipeline_mode<synchronous>, transform_indices = @transform_8, window_bounds = array<i64: 4, 768>}, {pipeline_mode = #tpu.pipeline_mode<synchronous>, transform_indices = @transform_9, window_bounds = array<i64: 1, 768>}, {transform_indices = @transform_10, window_bounds = array<i64: 9, 2, 128>}]} {
    %c0 = arith.constant 0 : index
    %c0_0 = arith.constant 0 : index
    %0 = vector.load %arg1[%c0, %c0_0] : memref<2x32xf32, #tpu.memory_space<vmem>>, vector<2x32xf32>
    %1 = arith.truncf %0 : vector<2x32xf32> to vector<2x32xbf16>
    %c0_1 = arith.constant 0 : index
    %c0_2 = arith.constant 0 : index
    %2 = vector.load %arg2[%c0_1, %c0_2] : memref<2x4xf32, #tpu.memory_space<vmem>>, vector<2x4xf32>
    %3 = arith.truncf %2 : vector<2x4xf32> to vector<2x4xbf16>
    %c0_3 = arith.constant 0 : index
    %c0_4 = arith.constant 0 : index
    %4 = vector.load %arg3[%c0_3, %c0_4] : memref<32x64xbf16, #tpu.memory_space<vmem>>, vector<32x64xbf16>
    %cst = arith.constant dense<0.000000e+00> : vector<2x64xf32>
    %5 = tpu.matmul %1, %4, %cst {dimension_numbers = #tpu.dot_dimension_numbers<[1], [0], [0], [1], [0, 0, 1, 1], [], []>} : vector<2x32xbf16>, vector<32x64xbf16>, vector<2x64xf32> -> vector<2x64xf32>
    %c0_5 = arith.constant 0 : index
    %c0_6 = arith.constant 0 : index
    %6 = vector.load %arg4[%c0_5, %c0_6] : memref<1x64xf32, #tpu.memory_space<vmem>>, vector<1x64xf32>
    %7 = vector.broadcast %6 : vector<1x64xf32> to vector<2x64xf32>
    %8 = arith.addf %5, %7 : vector<2x64xf32>
    %cst_7 = arith.constant 0.000000e+00 : f32
    %9 = vector.broadcast %cst_7 : f32 to vector<2x64xf32>
    %10 = arith.cmpf oge, %8, %9 : vector<2x64xf32>
    %cst_8 = arith.constant 0.00999999977 : f32
    %11 = vector.broadcast %cst_8 : f32 to vector<2x64xf32>
    %12 = arith.mulf %11, %8 : vector<2x64xf32>
    %13 = arith.select %10, %8, %12 : vector<2x64xi1>, vector<2x64xf32>
    %14 = arith.truncf %13 : vector<2x64xf32> to vector<2x64xbf16>
    %c0_9 = arith.constant 0 : index
    %c0_10 = arith.constant 0 : index
    %15 = vector.load %arg5[%c0_9, %c0_10] : memref<64x64xbf16, #tpu.memory_space<vmem>>, vector<64x64xbf16>
    %cst_11 = arith.constant dense<0.000000e+00> : vector<2x64xf32>
    %16 = tpu.matmul %14, %15, %cst_11 {dimension_numbers = #tpu.dot_dimension_numbers<[1], [0], [0], [1], [0, 0, 1, 1], [], []>} : vector<2x64xbf16>, vector<64x64xbf16>, vector<2x64xf32> -> vector<2x64xf32>
    %c0_12 = arith.constant 0 : index
    %c0_13 = arith.constant 0 : index
    %17 = vector.load %arg6[%c0_12, %c0_13] : memref<4x64xbf16, #tpu.memory_space<vmem>>, vector<4x64xbf16>
    %cst_14 = arith.constant dense<0.000000e+00> : vector<2x64xf32>
    %18 = tpu.matmul %3, %17, %cst_14 {dimension_numbers = #tpu.dot_dimension_numbers<[1], [0], [0], [1], [0, 0, 1, 1], [], []>} : vector<2x4xbf16>, vector<4x64xbf16>, vector<2x64xf32> -> vector<2x64xf32>
    %19 = arith.addf %16, %18 : vector<2x64xf32>
    %c0_15 = arith.constant 0 : index
    %c0_16 = arith.constant 0 : index
    %20 = vector.load %arg7[%c0_15, %c0_16] : memref<1x64xf32, #tpu.memory_space<vmem>>, vector<1x64xf32>
    %21 = vector.broadcast %20 : vector<1x64xf32> to vector<2x64xf32>
    %22 = arith.addf %19, %21 : vector<2x64xf32>
    %cst_17 = arith.constant 0.000000e+00 : f32
    %23 = vector.broadcast %cst_17 : f32 to vector<2x64xf32>
    %24 = arith.cmpf oge, %22, %23 : vector<2x64xf32>
    %cst_18 = arith.constant 0.00999999977 : f32
    %25 = vector.broadcast %cst_18 : f32 to vector<2x64xf32>
    %26 = arith.mulf %25, %22 : vector<2x64xf32>
    %27 = arith.select %24, %22, %26 : vector<2x64xi1>, vector<2x64xf32>
    %28 = arith.truncf %27 : vector<2x64xf32> to vector<2x64xbf16>
    %c0_19 = arith.constant 0 : index
    %c0_20 = arith.constant 0 : index
    %29 = vector.load %arg8[%c0_19, %c0_20] : memref<64x768xbf16, #tpu.memory_space<vmem>>, vector<64x768xbf16>
    %cst_21 = arith.constant dense<0.000000e+00> : vector<2x768xf32>
    %30 = tpu.matmul %28, %29, %cst_21 {dimension_numbers = #tpu.dot_dimension_numbers<[1], [0], [0], [1], [0, 0, 1, 1], [], []>} : vector<2x64xbf16>, vector<64x768xbf16>, vector<2x768xf32> -> vector<2x768xf32>
    %c0_22 = arith.constant 0 : index
    %c0_23 = arith.constant 0 : index
    %31 = vector.load %arg9[%c0_22, %c0_23] : memref<4x768xbf16, #tpu.memory_space<vmem>>, vector<4x768xbf16>
    %cst_24 = arith.constant dense<0.000000e+00> : vector<2x768xf32>
    %32 = tpu.matmul %3, %31, %cst_24 {dimension_numbers = #tpu.dot_dimension_numbers<[1], [0], [0], [1], [0, 0, 1, 1], [], []>} : vector<2x4xbf16>, vector<4x768xbf16>, vector<2x768xf32> -> vector<2x768xf32>
    %33 = arith.addf %30, %32 : vector<2x768xf32>
    %c0_25 = arith.constant 0 : index
    %c0_26 = arith.constant 0 : index
    %34 = vector.load %arg10[%c0_25, %c0_26] : memref<1x768xf32, #tpu.memory_space<vmem>>, vector<1x768xf32>
    %35 = vector.broadcast %34 : vector<1x768xf32> to vector<2x768xf32>
    %36 = arith.addf %33, %35 : vector<2x768xf32>
    %37 = vector.extract_strided_slice %36 {offsets = [0, 0], sizes = [2, 128], strides = [1, 1]} : vector<2x768xf32> to vector<2x128xf32>
    %38 = vector.extract_strided_slice %36 {offsets = [0, 128], sizes = [2, 128], strides = [1, 1]} : vector<2x768xf32> to vector<2x128xf32>
    %39 = vector.extract_strided_slice %36 {offsets = [0, 256], sizes = [2, 128], strides = [1, 1]} : vector<2x768xf32> to vector<2x128xf32>
    %40 = vector.extract_strided_slice %36 {offsets = [0, 384], sizes = [2, 128], strides = [1, 1]} : vector<2x768xf32> to vector<2x128xf32>
    %41 = vector.extract_strided_slice %36 {offsets = [0, 512], sizes = [2, 128], strides = [1, 1]} : vector<2x768xf32> to vector<2x128xf32>
    %42 = vector.extract_strided_slice %36 {offsets = [0, 640], sizes = [2, 128], strides = [1, 1]} : vector<2x768xf32> to vector<2x128xf32>
    %43 = arith.mulf %37, %37 : vector<2x128xf32>
    %44 = arith.mulf %38, %38 : vector<2x128xf32>
    %45 = arith.addf %43, %44 : vector<2x128xf32>
    %46 = arith.mulf %39, %39 : vector<2x128xf32>
    %47 = arith.addf %45, %46 : vector<2x128xf32>
    %cst_27 = arith.constant 1.000000e-24 : f32
    %48 = vector.broadcast %cst_27 : f32 to vector<2x128xf32>
    %49 = arith.maximumf %47, %48 : vector<2x128xf32>
    %50 = math.rsqrt %49 : vector<2x128xf32>
    %51 = arith.mulf %37, %50 : vector<2x128xf32>
    %52 = arith.mulf %38, %50 : vector<2x128xf32>
    %53 = arith.mulf %39, %50 : vector<2x128xf32>
    %54 = arith.mulf %51, %40 : vector<2x128xf32>
    %55 = arith.mulf %52, %41 : vector<2x128xf32>
    %56 = arith.addf %54, %55 : vector<2x128xf32>
    %57 = arith.mulf %53, %42 : vector<2x128xf32>
    %58 = arith.addf %56, %57 : vector<2x128xf32>
    %59 = arith.mulf %58, %51 : vector<2x128xf32>
    %60 = arith.subf %40, %59 : vector<2x128xf32>
    %61 = arith.mulf %58, %52 : vector<2x128xf32>
    %62 = arith.subf %41, %61 : vector<2x128xf32>
    %63 = arith.mulf %58, %53 : vector<2x128xf32>
    %64 = arith.subf %42, %63 : vector<2x128xf32>
    %65 = arith.mulf %60, %60 : vector<2x128xf32>
    %66 = arith.mulf %62, %62 : vector<2x128xf32>
    %67 = arith.addf %65, %66 : vector<2x128xf32>
    %68 = arith.mulf %64, %64 : vector<2x128xf32>
    %69 = arith.addf %67, %68 : vector<2x128xf32>
    %cst_28 = arith.constant 1.000000e-24 : f32
    %70 = vector.broadcast %cst_28 : f32 to vector<2x128xf32>
    %71 = arith.maximumf %69, %70 : vector<2x128xf32>
    %72 = math.rsqrt %71 : vector<2x128xf32>
    %73 = arith.mulf %60, %72 : vector<2x128xf32>
    %74 = arith.mulf %62, %72 : vector<2x128xf32>
    %75 = arith.mulf %64, %72 : vector<2x128xf32>
    %76 = arith.mulf %52, %75 : vector<2x128xf32>
    %77 = arith.mulf %53, %74 : vector<2x128xf32>
    %78 = arith.subf %76, %77 : vector<2x128xf32>
    %79 = arith.mulf %53, %73 : vector<2x128xf32>
    %80 = arith.mulf %51, %75 : vector<2x128xf32>
    %81 = arith.subf %79, %80 : vector<2x128xf32>
    %82 = arith.mulf %51, %74 : vector<2x128xf32>
    %83 = arith.mulf %52, %73 : vector<2x128xf32>
    %84 = arith.subf %82, %83 : vector<2x128xf32>
    %c0_29 = arith.constant 0 : index
    %c0_30 = arith.constant 0 : index
    %c0_31 = arith.constant 0 : index
    %85 = vector.load %arg11[%c0_29, %c0_30, %c0_31] : memref<9x2x128xf32, #tpu.memory_space<vmem>>, vector<1x2x128xf32>
    %86 = vector.shape_cast %85 : vector<1x2x128xf32> to vector<2x128xf32>
    %87 = vector.shape_cast %51 : vector<2x128xf32> to vector<1x2x128xf32>
    tpu.vector_store %arg11[%c0_29, %c0_30, %c0_31], %87 {strides = array<i32>} : memref<9x2x128xf32, #tpu.memory_space<vmem>>, vector<1x2x128xf32>,
    %c1 = arith.constant 1 : index
    %c0_32 = arith.constant 0 : index
    %c0_33 = arith.constant 0 : index
    %88 = vector.load %arg11[%c1, %c0_32, %c0_33] : memref<9x2x128xf32, #tpu.memory_space<vmem>>, vector<1x2x128xf32>
    %89 = vector.shape_cast %88 : vector<1x2x128xf32> to vector<2x128xf32>
    %90 = vector.shape_cast %73 : vector<2x128xf32> to vector<1x2x128xf32>
    tpu.vector_store %arg11[%c1, %c0_32, %c0_33], %90 {strides = array<i32>} : memref<9x2x128xf32, #tpu.memory_space<vmem>>, vector<1x2x128xf32>,
    %c2 = arith.constant 2 : index
    %c0_34 = arith.constant 0 : index
    %c0_35 = arith.constant 0 : index
    %91 = vector.load %arg11[%c2, %c0_34, %c0_35] : memref<9x2x128xf32, #tpu.memory_space<vmem>>, vector<1x2x128xf32>
    %92 = vector.shape_cast %91 : vector<1x2x128xf32> to vector<2x128xf32>
    %93 = vector.shape_cast %78 : vector<2x128xf32> to vector<1x2x128xf32>
    tpu.vector_store %arg11[%c2, %c0_34, %c0_35], %93 {strides = array<i32>} : memref<9x2x128xf32, #tpu.memory_space<vmem>>, vector<1x2x128xf32>,
    %c3 = arith.constant 3 : index
    %c0_36 = arith.constant 0 : index
    %c0_37 = arith.constant 0 : index
    %94 = vector.load %arg11[%c3, %c0_36, %c0_37] : memref<9x2x128xf32, #tpu.memory_space<vmem>>, vector<1x2x128xf32>
    %95 = vector.shape_cast %94 : vector<1x2x128xf32> to vector<2x128xf32>
    %96 = vector.shape_cast %52 : vector<2x128xf32> to vector<1x2x128xf32>
    tpu.vector_store %arg11[%c3, %c0_36, %c0_37], %96 {strides = array<i32>} : memref<9x2x128xf32, #tpu.memory_space<vmem>>, vector<1x2x128xf32>,
    %c4 = arith.constant 4 : index
    %c0_38 = arith.constant 0 : index
    %c0_39 = arith.constant 0 : index
    %97 = vector.load %arg11[%c4, %c0_38, %c0_39] : memref<9x2x128xf32, #tpu.memory_space<vmem>>, vector<1x2x128xf32>
    %98 = vector.shape_cast %97 : vector<1x2x128xf32> to vector<2x128xf32>
    %99 = vector.shape_cast %74 : vector<2x128xf32> to vector<1x2x128xf32>
    tpu.vector_store %arg11[%c4, %c0_38, %c0_39], %99 {strides = array<i32>} : memref<9x2x128xf32, #tpu.memory_space<vmem>>, vector<1x2x128xf32>,
    %c5 = arith.constant 5 : index
    %c0_40 = arith.constant 0 : index
    %c0_41 = arith.constant 0 : index
    %100 = vector.load %arg11[%c5, %c0_40, %c0_41] : memref<9x2x128xf32, #tpu.memory_space<vmem>>, vector<1x2x128xf32>
    %101 = vector.shape_cast %100 : vector<1x2x128xf32> to vector<2x128xf32>
    %102 = vector.shape_cast %81 : vector<2x128xf32> to vector<1x2x128xf32>
    tpu.vector_store %arg11[%c5, %c0_40, %c0_41], %102 {strides = array<i32>} : memref<9x2x128xf32, #tpu.memory_space<vmem>>, vector<1x2x128xf32>,
    %c6 = arith.constant 6 : index
    %c0_42 = arith.constant 0 : index
    %c0_43 = arith.constant 0 : index
    %103 = vector.load %arg11[%c6, %c0_42, %c0_43] : memref<9x2x128xf32, #tpu.memory_space<vmem>>, vector<1x2x128xf32>
    %104 = vector.shape_cast %103 : vector<1x2x128xf32> to vector<2x128xf32>
    %105 = vector.shape_cast %53 : vector<2x128xf32> to vector<1x2x128xf32>
    tpu.vector_store %arg11[%c6, %c0_42, %c0_43], %105 {strides = array<i32>} : memref<9x2x128xf32, #tpu.memory_space<vmem>>, vector<1x2x128xf32>,
    %c7 = arith.constant 7 : index
    %c0_44 = arith.constant 0 : index
    %c0_45 = arith.constant 0 : index
    %106 = vector.load %arg11[%c7, %c0_44, %c0_45] : memref<9x2x128xf32, #tpu.memory_space<vmem>>, vector<1x2x128xf32>
    %107 = vector.shape_cast %106 : vector<1x2x128xf32> to vector<2x128xf32>
    %108 = vector.shape_cast %75 : vector<2x128xf32> to vector<1x2x128xf32>
    tpu.vector_store %arg11[%c7, %c0_44, %c0_45], %108 {strides = array<i32>} : memref<9x2x128xf32, #tpu.memory_space<vmem>>, vector<1x2x128xf32>,
    %c8 = arith.constant 8 : index
    %c0_46 = arith.constant 0 : index
    %c0_47 = arith.constant 0 : index
    %109 = vector.load %arg11[%c8, %c0_46, %c0_47] : memref<9x2x128xf32, #tpu.memory_space<vmem>>, vector<1x2x128xf32>
    %110 = vector.shape_cast %109 : vector<1x2x128xf32> to vector<2x128xf32>
    %111 = vector.shape_cast %84 : vector<2x128xf32> to vector<1x2x128xf32>
    tpu.vector_store %arg11[%c8, %c0_46, %c0_47], %111 {strides = array<i32>} : memref<9x2x128xf32, #tpu.memory_space<vmem>>, vector<1x2x128xf32>,
    return
  }
  func.func @transform_0(%arg0: i32) -> (i32, i32) {
    %c0_i32 = arith.constant 0 : i32
    %c0_i32_0 = arith.constant 0 : i32
    return %arg0, %c0_i32 : i32, i32
  }
  func.func @transform_1(%arg0: i32) -> (i32, i32) {
    %c0_i32 = arith.constant 0 : i32
    %c0_i32_0 = arith.constant 0 : i32
    return %arg0, %c0_i32 : i32, i32
  }
  func.func @transform_2(%arg0: i32) -> (i32, i32) {
    %c0_i32 = arith.constant 0 : i32
    %c0_i32_0 = arith.constant 0 : i32
    %c0_i32_1 = arith.constant 0 : i32
    return %c0_i32, %c0_i32_0 : i32, i32
  }
  func.func @transform_3(%arg0: i32) -> (i32, i32) {
    %c0_i32 = arith.constant 0 : i32
    %c0_i32_0 = arith.constant 0 : i32
    %c0_i32_1 = arith.constant 0 : i32
    return %c0_i32, %c0_i32_0 : i32, i32
  }
  func.func @transform_4(%arg0: i32) -> (i32, i32) {
    %c0_i32 = arith.constant 0 : i32
    %c0_i32_0 = arith.constant 0 : i32
    %c0_i32_1 = arith.constant 0 : i32
    return %c0_i32, %c0_i32_0 : i32, i32
  }
  func.func @transform_5(%arg0: i32) -> (i32, i32) {
    %c0_i32 = arith.constant 0 : i32
    %c0_i32_0 = arith.constant 0 : i32
    %c0_i32_1 = arith.constant 0 : i32
    return %c0_i32, %c0_i32_0 : i32, i32
  }
  func.func @transform_6(%arg0: i32) -> (i32, i32) {
    %c0_i32 = arith.constant 0 : i32
    %c0_i32_0 = arith.constant 0 : i32
    %c0_i32_1 = arith.constant 0 : i32
    return %c0_i32, %c0_i32_0 : i32, i32
  }
  func.func @transform_7(%arg0: i32) -> (i32, i32) {
    %c0_i32 = arith.constant 0 : i32
    %c0_i32_0 = arith.constant 0 : i32
    %c0_i32_1 = arith.constant 0 : i32
    return %c0_i32, %c0_i32_0 : i32, i32
  }
  func.func @transform_8(%arg0: i32) -> (i32, i32) {
    %c0_i32 = arith.constant 0 : i32
    %c0_i32_0 = arith.constant 0 : i32
    %c0_i32_1 = arith.constant 0 : i32
    return %c0_i32, %c0_i32_0 : i32, i32
  }
  func.func @transform_9(%arg0: i32) -> (i32, i32) {
    %c0_i32 = arith.constant 0 : i32
    %c0_i32_0 = arith.constant 0 : i32
    %c0_i32_1 = arith.constant 0 : i32
    return %c0_i32, %c0_i32_0 : i32, i32
  }
  func.func @transform_10(%arg0: i32) -> (i32, i32, i32) {
    %c0_i32 = arith.constant 0 : i32
    %c0_i32_0 = arith.constant 0 : i32
    %c0_i32_1 = arith.constant 0 : i32
    return %c0_i32, %arg0, %c0_i32_0 : i32, i32, i32
  }
}

</mosaic_0001>

<llo_original>
// kernel: pose_vae_decoder.1
$region0: #{pose_vae_decoder.1}
  #allocation0 [shape = 'u32[]', space=smem, size = 0x4, offset = 0x4, fixed_abs, tag = 'smem constant byte address 0x4 - core index']
  #allocation1 [shape = 'u32[144,128]{1,0:T(1,128)}', space=vmem, size = 0x12000, scoped, tag = 'internal scratch']
  %s0 = inlined_call_operand.hbm [shape: f32[2,32], index: 0, kind: input, shape index: {}]
  %s1 = inlined_call_operand.vmem [shape: f32[2,4], index: 1, kind: input, shape index: {}]
  %s2 = inlined_call_operand.hbm [shape: bf16[32,64], index: 2, kind: input, shape index: {}]
  %s3 = inlined_call_operand.hbm [shape: f32[1,64], index: 3, kind: input, shape index: {}]
  %s4 = inlined_call_operand.hbm [shape: bf16[64,64], index: 4, kind: input, shape index: {}]
  %s5 = inlined_call_operand.vmem [shape: bf16[4,64], index: 5, kind: input, shape index: {}]
  %s6 = inlined_call_operand.hbm [shape: f32[1,64], index: 6, kind: input, shape index: {}]
  %s7 = inlined_call_operand.hbm [shape: bf16[64,768], index: 7, kind: input, shape index: {}]
  %s8 = inlined_call_operand.vmem [shape: bf16[4,768], index: 8, kind: input, shape index: {}]
  %s9 = inlined_call_operand.vmem [shape: f32[1,768], index: 9, kind: input, shape index: {}]
  %s10 = inlined_call_operand.vmem [shape: f32[9,2,128], index: 10, kind: output, shape index: {}]
  %s11 = sld [smem:[#allocation0]]
  $region74: #{pose_vae_decoder.1} parent=0
    _
  %s13 = ssub.s32 1, %s11
  %s14 = scalar_select 0, %s13, %s11
  $region1: #{pose_vae_decoder.1} parent=0
    #allocation2 [shape = 'u8[1024]{0}', space=vmem, size = 0x400, scoped, tag = 'input window, operand 0, single buffered']
    #allocation3 [shape = 's32[1]{0}', space=sflag, size = 0x4, scoped, tag = 'scoped memory for pose_vae_decoder.1']
    #allocation4 [shape = 'u8[8192]{0}', space=vmem, size = 0x2000, scoped, tag = 'input window, operand 2, single buffered']
    #allocation5 [shape = 's32[1]{0}', space=sflag, size = 0x4, scoped, tag = 'scoped memory for pose_vae_decoder.1']
    #allocation6 [shape = 'u8[512]{0}', space=vmem, size = 0x400, scoped, tag = 'input window, operand 3, single buffered']
    #allocation7 [shape = 'u8[16384]{0}', space=vmem, size = 0x4000, scoped, tag = 'input window, operand 4, single buffered']
    #allocation8 [shape = 's32[1]{0}', space=sflag, size = 0x4, scoped, tag = 'scoped memory for pose_vae_decoder.1']
    #allocation9 [shape = 'u8[512]{0}', space=vmem, size = 0x400, scoped, tag = 'input window, operand 6, single buffered']
    #allocation10 [shape = 'u8[98304]{0}', space=vmem, size = 0x18000, scoped, tag = 'input window, operand 7, single buffered']
    #allocation11 [shape = 's32[1]{0}', space=sflag, size = 0x4, scoped, tag = 'scoped memory for pose_vae_decoder.1']
    %15 = vsyncpa [#allocation3], 0
    %16 = vsyncpa [#allocation5], 0
    %17 = vsyncpa [#allocation8], 0
    %18 = vsyncpa [#allocation11], 0
    // Predicated region
    $region2: #{pose_vae_decoder.1} parent=1 // pred_check
      _
    $region3: #{pose_vae_decoder.1} parent=1 // pred_check_branch
      %20 = sbr.rel (0) target = $region5
    $region4: #{pose_vae_decoder.1} parent=1 // pred_region
      %s22 = ssub.s32 32, 32
      %23 = vsyncadd [#allocation3], %s22
      %s25 = sshll.u32 [#allocation2], 4
      %s26 = int_to_ptr.vmem [resolvable:$true] %s25
      %28 = dma.hbm_to_vmem [thread:$0]  %s0, 32, %s26, [#allocation3]
    $region5: #{pose_vae_decoder.1} parent=1 // pred_fallthru
      _
    // Predicated region
    $region6: #{pose_vae_decoder.1} parent=1 // pred_check
      _
    $region7: #{pose_vae_decoder.1} parent=1 // pred_check_branch
      %30 = sbr.rel (0) target = $region9
    $region8: #{pose_vae_decoder.1} parent=1 // pred_region
      _
    $region9: #{pose_vae_decoder.1} parent=1 // pred_fallthru
      _
    // Predicated region
    $region10: #{pose_vae_decoder.1} parent=1 // pred_check
      _
    $region11: #{pose_vae_decoder.1} parent=1 // pred_check_branch
      %32 = sbr.rel (0) target = $region13
    $region12: #{pose_vae_decoder.1} parent=1 // pred_region
      %s34 = ssub.s32 256, 256
      %35 = vsyncadd [#allocation5], %s34
      %s36 = sshll.u32 [#allocation4], 4
      %s37 = int_to_ptr.vmem [resolvable:$true] %s36
      %42 = dma.hbm_to_vmem [thread:$0]  %s2, 256, %s37, [#allocation5], 64, 64, 4
    $region13: #{pose_vae_decoder.1} parent=1 // pred_fallthru
      _
    // Predicated region
    $region14: #{pose_vae_decoder.1} parent=1 // pred_check
      _
    $region15: #{pose_vae_decoder.1} parent=1 // pred_check_branch
      %44 = sbr.rel (0) target = $region17
    $region16: #{pose_vae_decoder.1} parent=1 // pred_region
      %s46 = ssub.s32 16, 16
      %47 = vsyncadd [#allocation5], %s46
      %s49 = sshll.u32 [#allocation6], 4
      %s50 = int_to_ptr.vmem [resolvable:$true] %s49
      %52 = dma.hbm_to_vmem [thread:$0]  %s3, 16, %s50, [#allocation5]
    $region17: #{pose_vae_decoder.1} parent=1 // pred_fallthru
      _
    // Predicated region
    $region18: #{pose_vae_decoder.1} parent=1 // pred_check
      _
    $region19: #{pose_vae_decoder.1} parent=1 // pred_check_branch
      %54 = sbr.rel (0) target = $region21
    $region20: #{pose_vae_decoder.1} parent=1 // pred_region
      %s56 = ssub.s32 512, 512
      %57 = vsyncadd [#allocation8], %s56
      %s58 = sshll.u32 [#allocation7], 4
      %s59 = int_to_ptr.vmem [resolvable:$true] %s58
      %64 = dma.hbm_to_vmem [thread:$0]  %s4, 512, %s59, [#allocation8], 64, 64, 4
    $region21: #{pose_vae_decoder.1} parent=1 // pred_fallthru
      _
    // Predicated region
    $region22: #{pose_vae_decoder.1} parent=1 // pred_check
      _
    $region23: #{pose_vae_decoder.1} parent=1 // pred_check_branch
      %66 = sbr.rel (0) target = $region25
    $region24: #{pose_vae_decoder.1} parent=1 // pred_region
      _
    $region25: #{pose_vae_decoder.1} parent=1 // pred_fallthru
      _
    // Predicated region
    $region26: #{pose_vae_decoder.1} parent=1 // pred_check
      _
    $region27: #{pose_vae_decoder.1} parent=1 // pred_check_branch
      %68 = sbr.rel (0) target = $region29
    $region28: #{pose_vae_decoder.1} parent=1 // pred_region
      %s70 = ssub.s32 16, 16
      %71 = vsyncadd [#allocation8], %s70
      %s73 = sshll.u32 [#allocation9], 4
      %s74 = int_to_ptr.vmem [resolvable:$true] %s73
      %76 = dma.hbm_to_vmem [thread:$0]  %s6, 16, %s74, [#allocation8]
    $region29: #{pose_vae_decoder.1} parent=1 // pred_fallthru
      _
    // Predicated region
    $region30: #{pose_vae_decoder.1} parent=1 // pred_check
      _
    $region31: #{pose_vae_decoder.1} parent=1 // pred_check_branch
      %78 = sbr.rel (0) target = $region33
    $region32: #{pose_vae_decoder.1} parent=1 // pred_region
      %s80 = ssub.s32 3072, 3072
      %81 = vsyncadd [#allocation11], %s80
      %s82 = sshll.u32 [#allocation10], 4
      %s83 = int_to_ptr.vmem [resolvable:$true] %s82
      %88 = dma.hbm_to_vmem [thread:$0]  %s7, 3072, %s83, [#allocation11], 384, 384, 24
    $region33: #{pose_vae_decoder.1} parent=1 // pred_fallthru
      _
    // Predicated region
    $region34: #{pose_vae_decoder.1} parent=1 // pred_check
      _
    $region35: #{pose_vae_decoder.1} parent=1 // pred_check_branch
      %90 = sbr.rel (0) target = $region37
    $region36: #{pose_vae_decoder.1} parent=1 // pred_region
      _
    $region37: #{pose_vae_decoder.1} parent=1 // pred_fallthru
      _
    // Predicated region
    $region38: #{pose_vae_decoder.1} parent=1 // pred_check
      _
    $region39: #{pose_vae_decoder.1} parent=1 // pred_check_branch
      %92 = sbr.rel (0) target = $region41
    $region40: #{pose_vae_decoder.1} parent=1 // pred_region
      _
    $region41: #{pose_vae_decoder.1} parent=1 // pred_fallthru
      _
    // Predicated region
    $region42: #{pose_vae_decoder.1} parent=1 // pred_check
      _
    $region43: #{pose_vae_decoder.1} parent=1 // pred_check_branch
      %94 = sbr.rel (0) target = $region45
    $region44: #{pose_vae_decoder.1} parent=1 // pred_region
      %95 = dma.done [#allocation3], 32
    $region45: #{pose_vae_decoder.1} parent=1 // pred_fallthru
      _
    // Predicated region
    $region46: #{pose_vae_decoder.1} parent=1 // pred_check
      _
    $region47: #{pose_vae_decoder.1} parent=1 // pred_check_branch
      %97 = sbr.rel (0) target = $region49
    $region48: #{pose_vae_decoder.1} parent=1 // pred_region
      %98 = dma.done [#allocation5], 256
    $region49: #{pose_vae_decoder.1} parent=1 // pred_fallthru
      _
    // Predicated region
    $region50: #{pose_vae_decoder.1} parent=1 // pred_check
      _
    $region51: #{pose_vae_decoder.1} parent=1 // pred_check_branch
      %100 = sbr.rel (0) target = $region53
    $region52: #{pose_vae_decoder.1} parent=1 // pred_region
      %101 = dma.done [#allocation5], 16
    $region53: #{pose_vae_decoder.1} parent=1 // pred_fallthru
      _
    // Predicated region
    $region54: #{pose_vae_decoder.1} parent=1 // pred_check
      _
    $region55: #{pose_vae_decoder.1} parent=1 // pred_check_branch
      %103 = sbr.rel (0) target = $region57
    $region56: #{pose_vae_decoder.1} parent=1 // pred_region
      %104 = dma.done [#allocation8], 512
    $region57: #{pose_vae_decoder.1} parent=1 // pred_fallthru
      _
    // Predicated region
    $region58: #{pose_vae_decoder.1} parent=1 // pred_check
      _
    $region59: #{pose_vae_decoder.1} parent=1 // pred_check_branch
      %106 = sbr.rel (0) target = $region61
    $region60: #{pose_vae_decoder.1} parent=1 // pred_region
      %107 = dma.done [#allocation8], 16
    $region61: #{pose_vae_decoder.1} parent=1 // pred_fallthru
      _
    // Predicated region
    $region62: #{pose_vae_decoder.1} parent=1 // pred_check
      _
    $region63: #{pose_vae_decoder.1} parent=1 // pred_check_branch
      %109 = sbr.rel (0) target = $region65
    $region64: #{pose_vae_decoder.1} parent=1 // pred_region
      %110 = dma.done [#allocation11], 3072
    $region65: #{pose_vae_decoder.1} parent=1 // pred_fallthru
      _
    %v112 = vld [vmem:[#allocation2] sm:$0x3]
    %v113 = vpack.c.bf16 %v112, %v112
    %v114 = vld [vmem:[%s1] sm:$0x3]
    %v115 = vpack.c.bf16 %v114, %v114
    %v116 = vld [vmem:[#allocation4] sm:$0xf]
    %v117 = vld [vmem:[#allocation4 + $0x4] sm:$0xf]
    %v118 = vld [vmem:[#allocation4 + $0x8] sm:$0xf]
    %v119 = vld [vmem:[#allocation4 + $0xc] sm:$0xf]
    %v120 = vld [vmem:[#allocation6] sm:$0x1]
    %v122 = vlaneseq
    %v123 = vshrl.u32 %v122, 7
    %v124 = vsub.s32 0, %v123
    %v125 = vrot.slane %v120, %v124
    %v131 = vunpack.c.l.b16 %v116
    %v132 = vunpack.c.l.b16 %v117
    %v133 = vunpack.c.l.b16 %v118
    %v134 = vunpack.c.l.b16 %v119
    %v135 = vpack.c.b16 %v132, %v131
    %v136 = vpack.c.b16 %v134, %v133
    %vm139 = vcmask 261120
    %v141 = vsel %vm139, %v113, 0
    %143 = vmatprep.subr.bf16.mxu0 0
    %144 = vmatpush1.bf16.msra.mxu0 %v135
    %145 = vmatprep.subr.bf16.mxu0 0
    %146 = vmatpush1.bf16.msra.mxu0 %v136
    %147 = vmatprep.subr.bf16.mxu0 0
    %148 = vmatpush1.bf16.msra.mxu0 0
    %149 = vmatprep.subr.bf16.mxu0 0
    %150 = vmatpush1.bf16.msra.mxu0 0
    %151 = vmatprep.subr.bf16.mxu0 0
    %152 = vmatpush1.bf16.msra.mxu0 0
    %153 = vmatprep.subr.bf16.mxu0 0
    %154 = vmatpush1.bf16.msra.mxu0 0
    %155 = vmatprep.subr.bf16.mxu0 0
    %156 = vmatpush1.bf16.msra.mxu0 0
    %157 = vmatprep.subr.bf16.mxu0 0
    %158 = vmatpush1.bf16.msra.mxu0 0
    %159 = vmatprep.subr.bf16.mxu0 0
    %160 = vmatpush1.bf16.msra.mxu0 0
    %161 = vmatprep.subr.bf16.mxu0 0
    %162 = vmatpush1.bf16.msra.mxu0 0
    %163 = vmatprep.subr.bf16.mxu0 0
    %164 = vmatpush1.bf16.msra.mxu0 0
    %165 = vmatprep.subr.bf16.mxu0 0
    %166 = vmatpush1.bf16.msra.mxu0 0
    %167 = vmatprep.subr.bf16.mxu0 0
    %168 = vmatpush1.bf16.msra.mxu0 0
    %169 = vmatprep.subr.bf16.mxu0 0
    %170 = vmatpush1.bf16.msra.mxu0 0
    %171 = vmatprep.subr.bf16.mxu0 0
    %172 = vmatpush1.bf16.msra.mxu0 0
    %173 = vmatprep.subr.bf16.mxu0 0
    %174 = vmatpush1.bf16.msra.mxu0 0
    %175 = vmatprep.mubr.bf16.mxu0 0
    %176 = vmatmul.mubr.bf16.gmra.mrb[0].mxu0 %v141
    %v177 = vpop.f32.mrb[0].mxu0
    %v178 = vadd.f32 %v125, %v177
    %v179 = vpop.f32.mrb[0].mxu0
    %v180 = vpop.f32.mrb[0].mxu0
    %v181 = vpop.f32.mrb[0].mxu0
    %182 = vdwg.mxu0
    %vm183 = vcmp.ge.f32.partialorder %v178, 0.0
    %v184 = vmul.f32 %v178, 0.01
    %v185 = vsel %vm183, %v178, %v184
    %v186 = vpack.c.bf16 %v185, %v185
    %v187 = vld [vmem:[#allocation7] sm:$0xf]
    %v188 = vld [vmem:[#allocation7 + $0x4] sm:$0xf]
    %v189 = vld [vmem:[#allocation7 + $0x8] sm:$0xf]
    %v190 = vld [vmem:[#allocation7 + $0xc] sm:$0xf]
    %v191 = vld [vmem:[#allocation7 + $0x10] sm:$0xf]
    %v192 = vld [vmem:[#allocation7 + $0x14] sm:$0xf]
    %v193 = vld [vmem:[#allocation7 + $0x18] sm:$0xf]
    %v194 = vld [vmem:[#allocation7 + $0x1c] sm:$0xf]
    %v195 = vld [vmem:[%s5] sm:$0x3]
    %vm196 = vcmask 31744
    %v198 = vsel %vm196, %v115, 0
    %vm200 = vcmask 1041408
    %v202 = vsel %vm200, %v195, 0
    %204 = vmatprep.subr.bf16.mxu0 0
    %205 = vmatpush1.bf16.msra.mxu0 %v202
    %206 = vmatprep.subr.bf16.mxu0 0
    %207 = vmatpush1.bf16.msra.mxu0 0
    %208 = vmatprep.subr.bf16.mxu0 0
    %209 = vmatpush1.bf16.msra.mxu0 0
    %210 = vmatprep.subr.bf16.mxu0 0
    %211 = vmatpush1.bf16.msra.mxu0 0
    %212 = vmatprep.subr.bf16.mxu0 0
    %213 = vmatpush1.bf16.msra.mxu0 0
    %214 = vmatprep.subr.bf16.mxu0 0
    %215 = vmatpush1.bf16.msra.mxu0 0
    %216 = vmatprep.subr.bf16.mxu0 0
    %217 = vmatpush1.bf16.msra.mxu0 0
    %218 = vmatprep.subr.bf16.mxu0 0
    %219 = vmatpush1.bf16.msra.mxu0 0
    %220 = vmatprep.subr.bf16.mxu0 0
    %221 = vmatpush1.bf16.msra.mxu0 0
    %222 = vmatprep.subr.bf16.mxu0 0
    %223 = vmatpush1.bf16.msra.mxu0 0
    %224 = vmatprep.subr.bf16.mxu0 0
    %225 = vmatpush1.bf16.msra.mxu0 0
    %226 = vmatprep.subr.bf16.mxu0 0
    %227 = vmatpush1.bf16.msra.mxu0 0
    %228 = vmatprep.subr.bf16.mxu0 0
    %229 = vmatpush1.bf16.msra.mxu0 0
    %230 = vmatprep.subr.bf16.mxu0 0
    %231 = vmatpush1.bf16.msra.mxu0 0
    %232 = vmatprep.subr.bf16.mxu0 0
    %233 = vmatpush1.bf16.msra.mxu0 0
    %234 = vmatprep.subr.bf16.mxu0 0
    %235 = vmatpush1.bf16.msra.mxu0 0
    %236 = vmatprep.mubr.bf16.mxu0 0
    %237 = vmatmul.mubr.bf16.gmra.mrb[0].mxu0 %v198
    %v238 = vpop.f32.mrb[0].mxu0
    %v239 = vadd.f32 0.0, %v238
    %v240 = vpop.f32.mrb[0].mxu0
    %v241 = vpop.f32.mrb[0].mxu0
    %v242 = vpop.f32.mrb[0].mxu0
    %243 = vdwg.mxu0
    %v252 = vunpack.c.l.b16 %v187
    %v253 = vunpack.c.l.b16 %v188
    %v254 = vunpack.c.l.b16 %v189
    %v255 = vunpack.c.l.b16 %v190
    %v256 = vunpack.c.l.b16 %v191
    %v257 = vunpack.c.l.b16 %v192
    %v258 = vunpack.c.l.b16 %v193
    %v259 = vunpack.c.l.b16 %v194
    %v260 = vpack.c.b16 %v253, %v252
    %v261 = vpack.c.b16 %v255, %v254
    %v262 = vpack.c.b16 %v257, %v256
    %v263 = vpack.c.b16 %v259, %v258
    %vm268 = vcmask 523264
    %v270 = vsel %vm268, %v186, 0
    %272 = vmatprep.subr.bf16.mxu0 0
    %273 = vmatpush1.bf16.msra.mxu0 %v260
    %274 = vmatprep.subr.bf16.mxu0 0
    %275 = vmatpush1.bf16.msra.mxu0 %v261
    %276 = vmatprep.subr.bf16.mxu0 0
    %277 = vmatpush1.bf16.msra.mxu0 %v262
    %278 = vmatprep.subr.bf16.mxu0 0
    %279 = vmatpush1.bf16.msra.mxu0 %v263
    %280 = vmatprep.subr.bf16.mxu0 0
    %281 = vmatpush1.bf16.msra.mxu0 0
    %282 = vmatprep.subr.bf16.mxu0 0
    %283 = vmatpush1.bf16.msra.mxu0 0
    %284 = vmatprep.subr.bf16.mxu0 0
    %285 = vmatpush1.bf16.msra.mxu0 0
    %286 = vmatprep.subr.bf16.mxu0 0
    %287 = vmatpush1.bf16.msra.mxu0 0
    %288 = vmatprep.subr.bf16.mxu0 0
    %289 = vmatpush1.bf16.msra.mxu0 0
    %290 = vmatprep.subr.bf16.mxu0 0
    %291 = vmatpush1.bf16.msra.mxu0 0
    %292 = vmatprep.subr.bf16.mxu0 0
    %293 = vmatpush1.bf16.msra.mxu0 0
    %294 = vmatprep.subr.bf16.mxu0 0
    %295 = vmatpush1.bf16.msra.mxu0 0
    %296 = vmatprep.subr.bf16.mxu0 0
    %297 = vmatpush1.bf16.msra.mxu0 0
    %298 = vmatprep.subr.bf16.mxu0 0
    %299 = vmatpush1.bf16.msra.mxu0 0
    %300 = vmatprep.subr.bf16.mxu0 0
    %301 = vmatpush1.bf16.msra.mxu0 0
    %302 = vmatprep.subr.bf16.mxu0 0
    %303 = vmatpush1.bf16.msra.mxu0 0
    %304 = vmatprep.mubr.bf16.mxu0 0
    %305 = vmatmul.mubr.bf16.gmra.mrb[0].mxu0 %v270
    %v306 = vpop.f32.mrb[0].mxu0
    %v307 = vadd.f32 %v239, %v306
    %v308 = vpop.f32.mrb[0].mxu0
    %v309 = vpop.f32.mrb[0].mxu0
    %v310 = vpop.f32.mrb[0].mxu0
    %311 = vdwg.mxu0
    %v312 = vld [vmem:[#allocation9] sm:$0x1]
    %v314 = vlaneseq
    %v315 = vshrl.u32 %v314, 7
    %v316 = vsub.s32 0, %v315
    %v317 = vrot.slane %v312, %v316
    %v319 = vadd.f32 %v307, %v317
    %vm320 = vcmp.ge.f32.partialorder %v319, 0.0
    %v321 = vmul.f32 %v319, 0.01
    %v322 = vsel %vm320, %v319, %v321
    %v323 = vpack.c.bf16 %v322, %v322
    %v324 = vld [vmem:[#allocation10] sm:$0xff]
    %v325 = vld [vmem:[#allocation10 + $0x8] sm:$0xff]
    %v326 = vld [vmem:[#allocation10 + $0x10] sm:$0xff]
    %v327 = vld [vmem:[#allocation10 + $0x18] sm:$0xff]
    %v328 = vld [vmem:[#allocation10 + $0x20] sm:$0xff]
    %v329 = vld [vmem:[#allocation10 + $0x28] sm:$0xff]
    %v330 = vld [vmem:[#allocation10 + $0x30] sm:$0xff]
    %v331 = vld [vmem:[#allocation10 + $0x38] sm:$0xff]
    %v332 = vld [vmem:[#allocation10 + $0x40] sm:$0xff]
    %v333 = vld [vmem:[#allocation10 + $0x48] sm:$0xff]
    %v334 = vld [vmem:[#allocation10 + $0x50] sm:$0xff]
    %v335 = vld [vmem:[#allocation10 + $0x58] sm:$0xff]
    %v336 = vld [vmem:[#allocation10 + $0x60] sm:$0xff]
    %v337 = vld [vmem:[#allocation10 + $0x68] sm:$0xff]
    %v338 = vld [vmem:[#allocation10 + $0x70] sm:$0xff]
    %v339 = vld [vmem:[#allocation10 + $0x78] sm:$0xff]
    %v340 = vld [vmem:[#allocation10 + $0x80] sm:$0xff]
    %v341 = vld [vmem:[#allocation10 + $0x88] sm:$0xff]
    %v342 = vld [vmem:[#allocation10 + $0x90] sm:$0xff]
    %v343 = vld [vmem:[#allocation10 + $0x98] sm:$0xff]
    %v344 = vld [vmem:[#allocation10 + $0xa0] sm:$0xff]
    %v345 = vld [vmem:[#allocation10 + $0xa8] sm:$0xff]
    %v346 = vld [vmem:[#allocation10 + $0xb0] sm:$0xff]
    %v347 = vld [vmem:[#allocation10 + $0xb8] sm:$0xff]
    %v348 = vld [vmem:[%s8] sm:$0xff]
    %v349 = vld [vmem:[%s8 + $0x8] sm:$0xf]
    %v352 = vcombine.high %v348, %v348
    %v354 = vunpack.c.l.s4 1983009808
    %v355 = vunpack.c.0.s8 %v354
    %v356 = vlaneseq
    %v357 = vshrl.u32 %v356, 7
    %v358 = vsub.s32 %v355, %v357
    %v359 = vrot.slane %v348, %v358
    %v361 = vunpack.c.l.s4 1983009808
    %v362 = vunpack.c.0.s8 %v361
    %v363 = vlaneseq
    %v364 = vshrl.u32 %v363, 7
    %v365 = vsub.s32 %v362, %v364
    %v366 = vrot.slane %v352, %v365
    %v367 = vcombine.high %v359, %v359
    %v368 = vcombine.high %v366, %v366
    %v370 = vunpack.c.l.s4 1983009808
    %v371 = vunpack.c.0.s8 %v370
    %v372 = vlaneseq
    %v373 = vshrl.u32 %v372, 7
    %v374 = vsub.s32 %v371, %v373
    %v375 = vrot.slane %v349, %v374
    %v376 = vcombine.high %v375, %v375
    %v378 = vsel %vm200, %v359, 0
    %v381 = vsel %vm200, %v367, 0
    %v384 = vsel %vm200, %v366, 0
    %v387 = vsel %vm200, %v368, 0
    %v390 = vsel %vm200, %v375, 0
    %v393 = vsel %vm200, %v376, 0
    %395 = vmatprep.subr.bf16.mxu0 %v381
    %396 = vmatpush1.bf16.msra.mxu0 %v378
    %397 = vmatprep.subr.bf16.mxu0 0
    %398 = vmatpush1.bf16.msra.mxu0 0
    %399 = vmatprep.subr.bf16.mxu0 0
    %400 = vmatpush1.bf16.msra.mxu0 0
    %401 = vmatprep.subr.bf16.mxu0 0
    %402 = vmatpush1.bf16.msra.mxu0 0
    %403 = vmatprep.subr.bf16.mxu0 0
    %404 = vmatpush1.bf16.msra.mxu0 0
    %405 = vmatprep.subr.bf16.mxu0 0
    %406 = vmatpush1.bf16.msra.mxu0 0
    %407 = vmatprep.subr.bf16.mxu0 0
    %408 = vmatpush1.bf16.msra.mxu0 0
    %409 = vmatprep.subr.bf16.mxu0 0
    %410 = vmatpush1.bf16.msra.mxu0 0
    %411 = vmatprep.subr.bf16.mxu0 0
    %412 = vmatpush1.bf16.msra.mxu0 0
    %413 = vmatprep.subr.bf16.mxu0 0
    %414 = vmatpush1.bf16.msra.mxu0 0
    %415 = vmatprep.subr.bf16.mxu0 0
    %416 = vmatpush1.bf16.msra.mxu0 0
    %417 = vmatprep.subr.bf16.mxu0 0
    %418 = vmatpush1.bf16.msra.mxu0 0
    %419 = vmatprep.subr.bf16.mxu0 0
    %420 = vmatpush1.bf16.msra.mxu0 0
    %421 = vmatprep.subr.bf16.mxu0 0
    %422 = vmatpush1.bf16.msra.mxu0 0
    %423 = vmatprep.subr.bf16.mxu0 0
    %424 = vmatpush1.bf16.msra.mxu0 0
    %425 = vmatprep.subr.bf16.mxu0 0
    %426 = vmatpush1.bf16.msra.mxu0 0
    %427 = vmatprep.mubr.bf16.mxu0 0
    %428 = vmatmul.mubr.bf16.gmra.mrb[0].mxu0 %v198
    %v429 = vpop.f32.mrb[0].mxu0
    %v430 = vadd.f32 0.0, %v429
    %v431 = vpop.f32.mrb[0].mxu0
    %v432 = vadd.f32 0.0, %v431
    %v433 = vpop.f32.mrb[0].mxu0
    %v434 = vpop.f32.mrb[0].mxu0
    %435 = vdwg.mxu0
    %436 = vmatprep.subr.bf16.mxu0 %v387
    %437 = vmatpush1.bf16.msra.mxu0 %v384
    %438 = vmatprep.subr.bf16.mxu0 0
    %439 = vmatpush1.bf16.msra.mxu0 0
    %440 = vmatprep.subr.bf16.mxu0 0
    %441 = vmatpush1.bf16.msra.mxu0 0
    %442 = vmatprep.subr.bf16.mxu0 0
    %443 = vmatpush1.bf16.msra.mxu0 0
    %444 = vmatprep.subr.bf16.mxu0 0
    %445 = vmatpush1.bf16.msra.mxu0 0
    %446 = vmatprep.subr.bf16.mxu0 0
    %447 = vmatpush1.bf16.msra.mxu0 0
    %448 = vmatprep.subr.bf16.mxu0 0
    %449 = vmatpush1.bf16.msra.mxu0 0
    %450 = vmatprep.subr.bf16.mxu0 0
    %451 = vmatpush1.bf16.msra.mxu0 0
    %452 = vmatprep.subr.bf16.mxu0 0
    %453 = vmatpush1.bf16.msra.mxu0 0
    %454 = vmatprep.subr.bf16.mxu0 0
    %455 = vmatpush1.bf16.msra.mxu0 0
    %456 = vmatprep.subr.bf16.mxu0 0
    %457 = vmatpush1.bf16.msra.mxu0 0
    %458 = vmatprep.subr.bf16.mxu0 0
    %459 = vmatpush1.bf16.msra.mxu0 0
    %460 = vmatprep.subr.bf16.mxu0 0
    %461 = vmatpush1.bf16.msra.mxu0 0
    %462 = vmatprep.subr.bf16.mxu0 0
    %463 = vmatpush1.bf16.msra.mxu0 0
    %464 = vmatprep.subr.bf16.mxu0 0
    %465 = vmatpush1.bf16.msra.mxu0 0
    %466 = vmatprep.subr.bf16.mxu0 0
    %467 = vmatpush1.bf16.msra.mxu0 0
    %468 = vmatprep.mubr.bf16.mxu0 0
    %469 = vmatmul.mubr.bf16.gmra.mrb[0].mxu0 %v198
    %v470 = vpop.f32.mrb[0].mxu0
    %v471 = vadd.f32 0.0, %v470
    %v472 = vpop.f32.mrb[0].mxu0
    %v473 = vadd.f32 0.0, %v472
    %v474 = vpop.f32.mrb[0].mxu0
    %v475 = vpop.f32.mrb[0].mxu0
    %476 = vdwg.mxu0
    %477 = vmatprep.subr.bf16.mxu0 %v393
    %478 = vmatpush1.bf16.msra.mxu0 %v390
    %479 = vmatprep.subr.bf16.mxu0 0
    %480 = vmatpush1.bf16.msra.mxu0 0
    %481 = vmatprep.subr.bf16.mxu0 0
    %482 = vmatpush1.bf16.msra.mxu0 0
    %483 = vmatprep.subr.bf16.mxu0 0
    %484 = vmatpush1.bf16.msra.mxu0 0
    %485 = vmatprep.subr.bf16.mxu0 0
    %486 = vmatpush1.bf16.msra.mxu0 0
    %487 = vmatprep.subr.bf16.mxu0 0
    %488 = vmatpush1.bf16.msra.mxu0 0
    %489 = vmatprep.subr.bf16.mxu0 0
    %490 = vmatpush1.bf16.msra.mxu0 0
    %491 = vmatprep.subr.bf16.mxu0 0
    %492 = vmatpush1.bf16.msra.mxu0 0
    %493 = vmatprep.subr.bf16.mxu0 0
    %494 = vmatpush1.bf16.msra.mxu0 0
    %495 = vmatprep.subr.bf16.mxu0 0
    %496 = vmatpush1.bf16.msra.mxu0 0
    %497 = vmatprep.subr.bf16.mxu0 0
    %498 = vmatpush1.bf16.msra.mxu0 0
    %499 = vmatprep.subr.bf16.mxu0 0
    %500 = vmatpush1.bf16.msra.mxu0 0
    %501 = vmatprep.subr.bf16.mxu0 0
    %502 = vmatpush1.bf16.msra.mxu0 0
    %503 = vmatprep.subr.bf16.mxu0 0
    %504 = vmatpush1.bf16.msra.mxu0 0
    %505 = vmatprep.subr.bf16.mxu0 0
    %506 = vmatpush1.bf16.msra.mxu0 0
    %507 = vmatprep.subr.bf16.mxu0 0
    %508 = vmatpush1.bf16.msra.mxu0 0
    %509 = vmatprep.mubr.bf16.mxu0 0
    %510 = vmatmul.mubr.bf16.gmra.mrb[0].mxu0 %v198
    %v511 = vpop.f32.mrb[0].mxu0
    %v512 = vadd.f32 0.0, %v511
    %v513 = vpop.f32.mrb[0].mxu0
    %v514 = vadd.f32 0.0, %v513
    %v515 = vpop.f32.mrb[0].mxu0
    %v516 = vpop.f32.mrb[0].mxu0
    %517 = vdwg.mxu0
    %v542 = vunpack.c.l.b16 %v324
    %v543 = vunpack.c.h.b16 %v324
    %v544 = vunpack.c.l.b16 %v325
    %v545 = vunpack.c.h.b16 %v325
    %v546 = vunpack.c.l.b16 %v326
    %v547 = vunpack.c.h.b16 %v326
    %v548 = vunpack.c.l.b16 %v327
    %v549 = vunpack.c.h.b16 %v327
    %v550 = vunpack.c.l.b16 %v328
    %v551 = vunpack.c.h.b16 %v328
    %v552 = vunpack.c.l.b16 %v329
    %v553 = vunpack.c.h.b16 %v329
    %v554 = vunpack.c.l.b16 %v330
    %v555 = vunpack.c.h.b16 %v330
    %v556 = vunpack.c.l.b16 %v331
    %v557 = vunpack.c.h.b16 %v331
    %v558 = vunpack.c.l.b16 %v332
    %v559 = vunpack.c.h.b16 %v332
    %v560 = vunpack.c.l.b16 %v333
    %v561 = vunpack.c.h.b16 %v333
    %v562 = vunpack.c.l.b16 %v334
    %v563 = vunpack.c.h.b16 %v334
    %v564 = vunpack.c.l.b16 %v335
    %v565 = vunpack.c.h.b16 %v335
    %v566 = vunpack.c.l.b16 %v336
    %v567 = vunpack.c.h.b16 %v336
    %v568 = vunpack.c.l.b16 %v337
    %v569 = vunpack.c.h.b16 %v337
    %v570 = vunpack.c.l.b16 %v338
    %v571 = vunpack.c.h.b16 %v338
    %v572 = vunpack.c.l.b16 %v339
    %v573 = vunpack.c.h.b16 %v339
    %v574 = vunpack.c.l.b16 %v340
    %v575 = vunpack.c.h.b16 %v340
    %v576 = vunpack.c.l.b16 %v341
    %v577 = vunpack.c.h.b16 %v341
    %v578 = vunpack.c.l.b16 %v342
    %v579 = vunpack.c.h.b16 %v342
    %v580 = vunpack.c.l.b16 %v343
    %v581 = vunpack.c.h.b16 %v343
    %v582 = vunpack.c.l.b16 %v344
    %v583 = vunpack.c.h.b16 %v344
    %v584 = vunpack.c.l.b16 %v345
    %v585 = vunpack.c.h.b16 %v345
    %v586 = vunpack.c.l.b16 %v346
    %v587 = vunpack.c.h.b16 %v346
    %v588 = vunpack.c.l.b16 %v347
    %v589 = vunpack.c.h.b16 %v347
    %v590 = vpack.c.b16 %v548, %v542
    %v591 = vpack.c.b16 %v549, %v543
    %v592 = vpack.c.b16 %v550, %v544
    %v593 = vpack.c.b16 %v551, %v545
    %v594 = vpack.c.b16 %v552, %v546
    %v595 = vpack.c.b16 %v553, %v547
    %v596 = vpack.c.b16 %v560, %v554
    %v597 = vpack.c.b16 %v561, %v555
    %v598 = vpack.c.b16 %v562, %v556
    %v599 = vpack.c.b16 %v563, %v557
    %v600 = vpack.c.b16 %v564, %v558
    %v601 = vpack.c.b16 %v565, %v559
    %v602 = vpack.c.b16 %v572, %v566
    %v603 = vpack.c.b16 %v573, %v567
    %v604 = vpack.c.b16 %v574, %v568
    %v605 = vpack.c.b16 %v575, %v569
    %v606 = vpack.c.b16 %v576, %v570
    %v607 = vpack.c.b16 %v577, %v571
    %v608 = vpack.c.b16 %v584, %v578
    %v609 = vpack.c.b16 %v585, %v579
    %v610 = vpack.c.b16 %v586, %v580
    %v611 = vpack.c.b16 %v587, %v581
    %v612 = vpack.c.b16 %v588, %v582
    %v613 = vpack.c.b16 %v589, %v583
    %v639 = vsel %vm268, %v323, 0
    %641 = vmatprep.subr.bf16.mxu0 %v591
    %642 = vmatpush1.bf16.msra.mxu0 %v590
    %643 = vmatprep.subr.bf16.mxu0 %v597
    %644 = vmatpush1.bf16.msra.mxu0 %v596
    %645 = vmatprep.subr.bf16.mxu0 %v603
    %646 = vmatpush1.bf16.msra.mxu0 %v602
    %647 = vmatprep.subr.bf16.mxu0 %v609
    %648 = vmatpush1.bf16.msra.mxu0 %v608
    %649 = vmatprep.subr.bf16.mxu0 0
    %650 = vmatpush1.bf16.msra.mxu0 0
    %651 = vmatprep.subr.bf16.mxu0 0
    %652 = vmatpush1.bf16.msra.mxu0 0
    %653 = vmatprep.subr.bf16.mxu0 0
    %654 = vmatpush1.bf16.msra.mxu0 0
    %655 = vmatprep.subr.bf16.mxu0 0
    %656 = vmatpush1.bf16.msra.mxu0 0
    %657 = vmatprep.subr.bf16.mxu0 0
    %658 = vmatpush1.bf16.msra.mxu0 0
    %659 = vmatprep.subr.bf16.mxu0 0
    %660 = vmatpush1.bf16.msra.mxu0 0
    %661 = vmatprep.subr.bf16.mxu0 0
    %662 = vmatpush1.bf16.msra.mxu0 0
    %663 = vmatprep.subr.bf16.mxu0 0
    %664 = vmatpush1.bf16.msra.mxu0 0
    %665 = vmatprep.subr.bf16.mxu0 0
    %666 = vmatpush1.bf16.msra.mxu0 0
    %667 = vmatprep.subr.bf16.mxu0 0
    %668 = vmatpush1.bf16.msra.mxu0 0
    %669 = vmatprep.subr.bf16.mxu0 0
    %670 = vmatpush1.bf16.msra.mxu0 0
    %671 = vmatprep.subr.bf16.mxu0 0
    %672 = vmatpush1.bf16.msra.mxu0 0
    %673 = vmatprep.mubr.bf16.mxu0 0
    %674 = vmatmul.mubr.bf16.gmra.mrb[0].mxu0 %v639
    %v675 = vpop.f32.mrb[0].mxu0
    %v676 = vadd.f32 %v430, %v675
    %v677 = vpop.f32.mrb[0].mxu0
    %v678 = vadd.f32 %v432, %v677
    %v679 = vpop.f32.mrb[0].mxu0
    %v680 = vpop.f32.mrb[0].mxu0
    %681 = vdwg.mxu0
    %682 = vmatprep.subr.bf16.mxu0 %v593
    %683 = vmatpush1.bf16.msra.mxu0 %v592
    %684 = vmatprep.subr.bf16.mxu0 %v599
    %685 = vmatpush1.bf16.msra.mxu0 %v598
    %686 = vmatprep.subr.bf16.mxu0 %v605
    %687 = vmatpush1.bf16.msra.mxu0 %v604
    %688 = vmatprep.subr.bf16.mxu0 %v611
    %689 = vmatpush1.bf16.msra.mxu0 %v610
    %690 = vmatprep.subr.bf16.mxu0 0
    %691 = vmatpush1.bf16.msra.mxu0 0
    %692 = vmatprep.subr.bf16.mxu0 0
    %693 = vmatpush1.bf16.msra.mxu0 0
    %694 = vmatprep.subr.bf16.mxu0 0
    %695 = vmatpush1.bf16.msra.mxu0 0
    %696 = vmatprep.subr.bf16.mxu0 0
    %697 = vmatpush1.bf16.msra.mxu0 0
    %698 = vmatprep.subr.bf16.mxu0 0
    %699 = vmatpush1.bf16.msra.mxu0 0
    %700 = vmatprep.subr.bf16.mxu0 0
    %701 = vmatpush1.bf16.msra.mxu0 0
    %702 = vmatprep.subr.bf16.mxu0 0
    %703 = vmatpush1.bf16.msra.mxu0 0
    %704 = vmatprep.subr.bf16.mxu0 0
    %705 = vmatpush1.bf16.msra.mxu0 0
    %706 = vmatprep.subr.bf16.mxu0 0
    %707 = vmatpush1.bf16.msra.mxu0 0
    %708 = vmatprep.subr.bf16.mxu0 0
    %709 = vmatpush1.bf16.msra.mxu0 0
    %710 = vmatprep.subr.bf16.mxu0 0
    %711 = vmatpush1.bf16.msra.mxu0 0
    %712 = vmatprep.subr.bf16.mxu0 0
    %713 = vmatpush1.bf16.msra.mxu0 0
    %714 = vmatprep.mubr.bf16.mxu0 0
    %715 = vmatmul.mubr.bf16.gmra.mrb[0].mxu0 %v639
    %v716 = vpop.f32.mrb[0].mxu0
    %v717 = vadd.f32 %v471, %v716
    %v718 = vpop.f32.mrb[0].mxu0
    %v719 = vadd.f32 %v473, %v718
    %v720 = vpop.f32.mrb[0].mxu0
    %v721 = vpop.f32.mrb[0].mxu0
    %722 = vdwg.mxu0
    %723 = vmatprep.subr.bf16.mxu0 %v595
    %724 = vmatpush1.bf16.msra.mxu0 %v594
    %725 = vmatprep.subr.bf16.mxu0 %v601
    %726 = vmatpush1.bf16.msra.mxu0 %v600
    %727 = vmatprep.subr.bf16.mxu0 %v607
    %728 = vmatpush1.bf16.msra.mxu0 %v606
    %729 = vmatprep.subr.bf16.mxu0 %v613
    %730 = vmatpush1.bf16.msra.mxu0 %v612
    %731 = vmatprep.subr.bf16.mxu0 0
    %732 = vmatpush1.bf16.msra.mxu0 0
    %733 = vmatprep.subr.bf16.mxu0 0
    %734 = vmatpush1.bf16.msra.mxu0 0
    %735 = vmatprep.subr.bf16.mxu0 0
    %736 = vmatpush1.bf16.msra.mxu0 0
    %737 = vmatprep.subr.bf16.mxu0 0
    %738 = vmatpush1.bf16.msra.mxu0 0
    %739 = vmatprep.subr.bf16.mxu0 0
    %740 = vmatpush1.bf16.msra.mxu0 0
    %741 = vmatprep.subr.bf16.mxu0 0
    %742 = vmatpush1.bf16.msra.mxu0 0
    %743 = vmatprep.subr.bf16.mxu0 0
    %744 = vmatpush1.bf16.msra.mxu0 0
    %745 = vmatprep.subr.bf16.mxu0 0
    %746 = vmatpush1.bf16.msra.mxu0 0
    %747 = vmatprep.subr.bf16.mxu0 0
    %748 = vmatpush1.bf16.msra.mxu0 0
    %749 = vmatprep.subr.bf16.mxu0 0
    %750 = vmatpush1.bf16.msra.mxu0 0
    %751 = vmatprep.subr.bf16.mxu0 0
    %752 = vmatpush1.bf16.msra.mxu0 0
    %753 = vmatprep.subr.bf16.mxu0 0
    %754 = vmatpush1.bf16.msra.mxu0 0
    %755 = vmatprep.mubr.bf16.mxu0 0
    %756 = vmatmul.mubr.bf16.gmra.mrb[0].mxu0 %v639
    %v757 = vpop.f32.mrb[0].mxu0
    %v758 = vadd.f32 %v512, %v757
    %v759 = vpop.f32.mrb[0].mxu0
    %v760 = vadd.f32 %v514, %v759
    %v761 = vpop.f32.mrb[0].mxu0
    %v762 = vpop.f32.mrb[0].mxu0
    %763 = vdwg.mxu0
    %v764 = vld [vmem:[%s9] sm:$0x3f]
    %v766 = vlaneseq
    %v767 = vshrl.u32 %v766, 7
    %v768 = vsub.s32 0, %v767
    %v769 = vrot.slane %v764, %v768
    %v770 = vlaneseq
    %v771 = vshrl.u32 %v770, 7
    %v772 = vsub.s32 1, %v771
    %v773 = vrot.slane %v764, %v772
    %v774 = vlaneseq
    %v775 = vshrl.u32 %v774, 7
    %v776 = vsub.s32 2, %v775
    %v777 = vrot.slane %v764, %v776
    %v778 = vlaneseq
    %v779 = vshrl.u32 %v778, 7
    %v780 = vsub.s32 3, %v779
    %v781 = vrot.slane %v764, %v780
    %v782 = vlaneseq
    %v783 = vshrl.u32 %v782, 7
    %v784 = vsub.s32 4, %v783
    %v785 = vrot.slane %v764, %v784
    %v786 = vlaneseq
    %v787 = vshrl.u32 %v786, 7
    %v788 = vsub.s32 5, %v787
    %v789 = vrot.slane %v764, %v788
    %v796 = vadd.f32 %v676, %v769
    %v797 = vadd.f32 %v678, %v773
    %v798 = vadd.f32 %v717, %v777
    %v799 = vadd.f32 %v719, %v781
    %v800 = vadd.f32 %v758, %v785
    %v801 = vadd.f32 %v760, %v789
    %v802 = vmul.f32 %v796, %v796
    %v803 = vmul.f32 %v797, %v797
    %v804 = vadd.f32 %v802, %v803
    %v805 = vmul.f32 %v798, %v798
    %v806 = vadd.f32 %v804, %v805
    %v807 = vmax.f32 %v806, 1e-24
    %v808 = vrsqrt.pop %v807
    %v809 = vmul.f32 %v796, %v808
    %v810 = vmul.f32 %v797, %v808
    %v811 = vmul.f32 %v798, %v808
    %v812 = vmul.f32 %v809, %v799
    %v813 = vmul.f32 %v810, %v800
    %v814 = vadd.f32 %v812, %v813
    %v815 = vmul.f32 %v811, %v801
    %v816 = vadd.f32 %v814, %v815
    %v817 = vmul.f32 %v816, %v809
    %v818 = vsub.f32 %v799, %v817
    %v819 = vmul.f32 %v816, %v810
    %v820 = vsub.f32 %v800, %v819
    %v821 = vmul.f32 %v816, %v811
    %v822 = vsub.f32 %v801, %v821
    %v823 = vmul.f32 %v818, %v818
    %v824 = vmul.f32 %v820, %v820
    %v825 = vadd.f32 %v823, %v824
    %v826 = vmul.f32 %v822, %v822
    %v827 = vadd.f32 %v825, %v826
    %v828 = vmax.f32 %v827, 1e-24
    %v829 = vrsqrt.pop %v828
    %v830 = vmul.f32 %v818, %v829
    %v831 = vmul.f32 %v820, %v829
    %v832 = vmul.f32 %v822, %v829
    %v833 = vmul.f32 %v810, %v832
    %v834 = vmul.f32 %v811, %v831
    %v835 = vsub.f32 %v833, %v834
    %v836 = vmul.f32 %v811, %v830
    %v837 = vmul.f32 %v809, %v832
    %v838 = vsub.f32 %v836, %v837
    %v839 = vmul.f32 %v809, %v831
    %v840 = vmul.f32 %v810, %v830
    %v841 = vsub.f32 %v839, %v840
    %842 = vst [vmem:[%s10] sm:$0x3] %v809
    %s843 = scalar_lea.vmem %s10, 2
    %844 = vst [vmem:[%s843] sm:$0x3] %v830
    %s845 = scalar_lea.vmem %s10, 4
    %846 = vst [vmem:[%s845] sm:$0x3] %v835
    %s847 = scalar_lea.vmem %s10, 6
    %848 = vst [vmem:[%s847] sm:$0x3] %v810
    %s849 = scalar_lea.vmem %s10, 8
    %850 = vst [vmem:[%s849] sm:$0x3] %v831
    %s851 = scalar_lea.vmem %s10, 10
    %852 = vst [vmem:[%s851] sm:$0x3] %v838
    %s853 = scalar_lea.vmem %s10, 12
    %854 = vst [vmem:[%s853] sm:$0x3] %v811
    %s855 = scalar_lea.vmem %s10, 14
    %856 = vst [vmem:[%s855] sm:$0x3] %v832
    %s857 = scalar_lea.vmem %s10, 16
    %858 = vst [vmem:[%s857] sm:$0x3] %v841
    // Predicated region
    $region66: #{pose_vae_decoder.1} parent=1 // pred_check
      _
    $region67: #{pose_vae_decoder.1} parent=1 // pred_check_branch
      %860 = sbr.rel (0) target = $region69
    $region68: #{pose_vae_decoder.1} parent=1 // pred_region
      _
    $region69: #{pose_vae_decoder.1} parent=1 // pred_fallthru
      _
    // Predicated region
    $region70: #{pose_vae_decoder.1} parent=1 // pred_check
      _
    $region71: #{pose_vae_decoder.1} parent=1 // pred_check_branch
      %862 = sbr.rel (0) target = $region73
    $region72: #{pose_vae_decoder.1} parent=1 // pred_region
      _
    $region73: #{pose_vae_decoder.1} parent=1 // pred_fallthru
      _
    %863 = vsyncpa [#allocation3], 1
    %864 = vsyncpa [#allocation5], 1
    %865 = vsyncpa [#allocation8], 1
    %866 = vsyncpa [#allocation11], 1

</llo_original>
